<compile_context>
chip_gen: v7x
topology: tpu7x:2x2x1
jax: 0.10.0
libtpu: 0.0.40
codegen_flags: <defaults>
</compile_context>

<pallas_src>
import functools

import jax
import jax.numpy as jnp
from jax.experimental import pallas as pl
from jax.experimental.pallas import tpu as pltpu

DIMS = (8, 8)
TEMPERATURE = 0.015
N_PIXELS = DIMS[0] * DIMS[1]           # 64  : encoded subspace dimension
N_MEAS_WIRES = sum(DIMS) // 2          # 8   : wires seen by PyramidQDense / MeasureLayer
NUM_MEASUREMENTS = 2 ** N_MEAS_WIRES   # 256 : computational-basis measurement outcomes
NUM_CLASSES = 10
N_OUT_PAD = 128                        # lane-dense padded output width
TB_MAX = 4096                          # max batch-tile rows (per review: 2048-4096)
ROW_ALIGN = 16                         # bf16-friendly sublane multiple


def _qcnn_kernel(x_ref, wfused_ref, wpost_ref, bpost_ref, out_ref):
    """One batch tile per grid step; all weights stay VMEM-resident.

    x_ref      : [TB, 64]    flattened images (bf16)
    wfused_ref : [64, 256]   fused qconv @ qpool @ qdense (bf16)
    wpost_ref  : [256, 128]  classifier weight^T * (1/T), zero-padded cols (bf16)
    bpost_ref  : [1, 128]    classifier bias, zero-padded (f32)
    out_ref    : [TB, 128]   padded logits (bf16)
    """
    # --- OneHotAmplitude encoder: amplitude-normalize each image (f32) -------
    x = x_ref[...].astype(jnp.float32)                                  # [TB, 64]
    norm2 = jnp.sum(x * x, axis=-1, keepdims=True)
    psi = x * jax.lax.rsqrt(norm2 + 1e-12)                              # unit statevector
    # --- fused QConv2d -> QPooling -> PyramidQDense (single MXU pass) --------
    psi = jnp.dot(psi.astype(jnp.bfloat16), wfused_ref[...],
                  preferred_element_type=jnp.float32)                   # [TB, 256]
    # --- MeasureLayer: probabilities of the 256 basis states (f32) -----------
    probs = psi * psi
    # --- classical Linear(256, 10) with 1/temperature pre-folded -------------
    logits = (
        jnp.dot(probs.astype(jnp.bfloat16), wpost_ref[...],
                preferred_element_type=jnp.float32)
        + bpost_ref[...]
    )
    out_ref[...] = logits.astype(out_ref.dtype)                         # bf16 write


def init_qcnn_params(key):
    """Deterministic synthetic parameters with quantum-consistent structure."""
    k1, k2, k3, k4, k5 = jax.random.split(key, 5)
    # Orthogonal 64x64 "conv" unitary (real part).
    u_conv = jnp.linalg.qr(jax.random.normal(k1, (N_PIXELS, N_PIXELS), jnp.float32))[0]
    # 64x256 isometry with orthonormal rows (norm-preserving pooling 16->8 wires).
    q_full = jnp.linalg.qr(
        jax.random.normal(k2, (NUM_MEASUREMENTS, NUM_MEASUREMENTS), jnp.float32))[0]
    v_pool = q_full[:, :N_PIXELS].T                                     # [64, 256]
    # Orthogonal 256x256 "pyramid dense" unitary.
    u_dense = jnp.linalg.qr(
        jax.random.normal(k3, (NUM_MEASUREMENTS, NUM_MEASUREMENTS), jnp.float32))[0]
    # Classical Linear(256, 10): PyTorch default uniform(-1/sqrt(fan_in), +...).
    bound = 1.0 / jnp.sqrt(jnp.float32(NUM_MEASUREMENTS))
    w_post = jax.random.uniform(k4, (NUM_CLASSES, NUM_MEASUREMENTS),
                                jnp.float32, -bound, bound)
    b_post = jax.random.uniform(k5, (NUM_CLASSES,), jnp.float32, -bound, bound)

    # --- host-side algebraic fusion (exact): uconv @ vpool @ udense ----------
    w_fused = (u_conv @ v_pool @ u_dense).astype(jnp.float32)           # [64, 256]
    # --- fold 1/temperature into classifier weight; pad to 128 lanes ---------
    w_post_t = (w_post.T * (1.0 / TEMPERATURE)).astype(jnp.float32)     # [256, 10]
    w_post_pad = jnp.zeros((NUM_MEASUREMENTS, N_OUT_PAD), jnp.float32)
    w_post_pad = w_post_pad.at[:, :NUM_CLASSES].set(w_post_t)
    b_post_pad = jnp.zeros((1, N_OUT_PAD), jnp.float32)
    b_post_pad = b_post_pad.at[0, :NUM_CLASSES].set(b_post)

    return (w_fused.astype(jnp.bfloat16),        # [64, 256]   bf16 MXU operand
            w_post_pad.astype(jnp.bfloat16),     # [256, 128]  bf16 MXU operand
            b_post_pad)                          # [1, 128]    f32 bias


def _round_up(n, m):
    return ((n + m - 1) // m) * m


def _choose_tb(b):
    """Large tiles to amortize per-step overhead, but >=2 grid steps when the
    batch allows it so v7x's two TensorCores both get work."""
    bm = _round_up(b, ROW_ALIGN)
    if bm <= ROW_ALIGN:
        return ROW_ALIGN                                   # single minimal tile
    if bm <= 2 * TB_MAX:
        return min(TB_MAX, _round_up(pl.cdiv(bm, 2), ROW_ALIGN))   # ~2 steps
    return TB_MAX


@functools.partial(jax.jit, static_argnames=("tb",))
def _qcnn_call(x_flat_bf16, w_fused, w_post_pad, b_post_pad, *, tb):
    b_pad = x_flat_bf16.shape[0]
    grid = (pl.cdiv(b_pad, tb),)

    weight_bytes = (w_fused.size * 2 + w_post_pad.size * 2 + b_post_pad.size * 4)
    cost = pl.CostEstimate(
        flops=2 * b_pad * (N_PIXELS * NUM_MEASUREMENTS + NUM_MEASUREMENTS * N_OUT_PAD),
        bytes_accessed=b_pad * (N_PIXELS * 2 + N_OUT_PAD * 2) + weight_bytes,
        transcendentals=b_pad,
    )

    return pl.pallas_call(
        _qcnn_kernel,
        out_shape=jax.ShapeDtypeStruct((b_pad, N_OUT_PAD), jnp.bfloat16),
        grid=grid,
        in_specs=[
            pl.BlockSpec((tb, N_PIXELS), lambda i: (i, 0)),
            pl.BlockSpec((N_PIXELS, NUM_MEASUREMENTS), lambda i: (0, 0)),
            pl.BlockSpec((NUM_MEASUREMENTS, N_OUT_PAD), lambda i: (0, 0)),
            pl.BlockSpec((1, N_OUT_PAD), lambda i: (0, 0)),
        ],
        out_specs=pl.BlockSpec((tb, N_OUT_PAD), lambda i: (i, 0)),
        compiler_params=pltpu.CompilerParams(
            dimension_semantics=("parallel",),
            vmem_limit_bytes=48 * 1024 * 1024,   # headroom; < v7x 64 MiB physical
        ),
        cost_estimate=cost,
    )(x_flat_bf16, w_fused, w_post_pad, b_post_pad)


def qcnn_forward(x, params):
    if x.shape[-2:] != DIMS:
        raise ValueError("Image dimensions do not match QCNN dimensions.")
    if x.ndim == 4:
        x = jnp.squeeze(x, axis=1)
    b = x.shape[0]
    # Cast to bf16 before padding so the host-side copy moves half the bytes.
    x_flat = x.reshape(b, N_PIXELS).astype(jnp.bfloat16)

    # Pad batch to a multiple of the tile (padded rows are zero; they only
    # produce bias values which are sliced away below).
    tb = _choose_tb(b)
    b_pad = pl.cdiv(b, tb) * tb
    if b_pad != b:
        x_flat = jnp.pad(x_flat, ((0, b_pad - b), (0, 0)))

    w_fused, w_post_pad, b_post_pad = params
    out_pad = _qcnn_call(x_flat, w_fused, w_post_pad, b_post_pad, tb=tb)
    return out_pad[:b, :NUM_CLASSES].astype(jnp.float32)


if __name__ == "__main__":
    key = jax.random.PRNGKey(0)
    k_x, k_p = jax.random.split(key)
    # Small deterministic input consistent with the module: NCHW [2, 1, 8, 8].
    x = jax.random.uniform(k_x, (2, 1, DIMS[0], DIMS[1]), jnp.float32)
    params = init_qcnn_params(k_p)

    out = qcnn_forward(x, params)
    out = jax.block_until_ready(out)
    assert out.shape == (2, NUM_CLASSES) and out.dtype == jnp.float32
    assert bool(jnp.all(jnp.isfinite(out)))
    print("KERNEL_OK")
</pallas_src>

<mosaic_0001>
module attributes {stable_mosaic.version = 11 : i64} {
  func.func @_qcnn_kernel(%arg0: i32, %arg1: memref<16x64xbf16, #tpu.memory_space<vmem>>, %arg2: memref<64x256xbf16, #tpu.memory_space<vmem>>, %arg3: memref<256x128xbf16, #tpu.memory_space<vmem>>, %arg4: memref<1x128xf32, #tpu.memory_space<vmem>>, %arg5: memref<16x128xbf16, #tpu.memory_space<vmem>>) attributes {dimension_semantics = [#tpu.dimension_semantics<parallel>], iteration_bounds = array<i64: 1>, scalar_prefetch = 0 : i64, scratch_operands = 0 : i64, tpu.core_type = #tpu.core_type<tc>, window_params = [{transform_indices = @transform_0, window_bounds = array<i64: 16, 64>}, {pipeline_mode = #tpu.pipeline_mode<synchronous>, transform_indices = @transform_1, window_bounds = array<i64: 64, 256>}, {pipeline_mode = #tpu.pipeline_mode<synchronous>, transform_indices = @transform_2, window_bounds = array<i64: 256, 128>}, {pipeline_mode = #tpu.pipeline_mode<synchronous>, transform_indices = @transform_3, window_bounds = array<i64: 1, 128>}, {transform_indices = @transform_4, window_bounds = array<i64: 16, 128>}]} {
    %c0 = arith.constant 0 : index
    %c0_0 = arith.constant 0 : index
    %0 = vector.load %arg1[%c0, %c0_0] : memref<16x64xbf16, #tpu.memory_space<vmem>>, vector<16x64xbf16>
    %1 = arith.extf %0 : vector<16x64xbf16> to vector<16x64xf32>
    %2 = arith.mulf %1, %1 : vector<16x64xf32>
    %cst = arith.constant dense<0.000000e+00> : vector<16xf32>
    %3 = vector.multi_reduction <add>, %2, %cst [1] : vector<16x64xf32> to vector<16xf32>
    %4 = vector.shape_cast %3 : vector<16xf32> to vector<16x1xf32>
    %cst_1 = arith.constant 9.99999996E-13 : f32
    %5 = vector.broadcast %cst_1 : f32 to vector<16x1xf32>
    %6 = arith.addf %4, %5 : vector<16x1xf32>
    %7 = math.rsqrt %6 : vector<16x1xf32>
    %8 = vector.broadcast %7 : vector<16x1xf32> to vector<16x64xf32>
    %9 = arith.mulf %1, %8 : vector<16x64xf32>
    %10 = arith.truncf %9 : vector<16x64xf32> to vector<16x64xbf16>
    %c0_2 = arith.constant 0 : index
    %c0_3 = arith.constant 0 : index
    %11 = vector.load %arg2[%c0_2, %c0_3] : memref<64x256xbf16, #tpu.memory_space<vmem>>, vector<64x256xbf16>
    %cst_4 = arith.constant dense<0.000000e+00> : vector<16x256xf32>
    %12 = tpu.matmul %10, %11, %cst_4 {dimension_numbers = #tpu.dot_dimension_numbers<[1], [0], [0], [1], [0, 0, 1, 1], [], []>} : vector<16x64xbf16>, vector<64x256xbf16>, vector<16x256xf32> -> vector<16x256xf32>
    %13 = arith.mulf %12, %12 : vector<16x256xf32>
    %14 = arith.truncf %13 : vector<16x256xf32> to vector<16x256xbf16>
    %c0_5 = arith.constant 0 : index
    %c0_6 = arith.constant 0 : index
    %15 = vector.load %arg3[%c0_5, %c0_6] : memref<256x128xbf16, #tpu.memory_space<vmem>>, vector<256x128xbf16>
    %cst_7 = arith.constant dense<0.000000e+00> : vector<16x128xf32>
    %16 = tpu.matmul %14, %15, %cst_7 {dimension_numbers = #tpu.dot_dimension_numbers<[1], [0], [0], [1], [0, 0, 1, 1], [], []>} : vector<16x256xbf16>, vector<256x128xbf16>, vector<16x128xf32> -> vector<16x128xf32>
    %c0_8 = arith.constant 0 : index
    %c0_9 = arith.constant 0 : index
    %17 = vector.load %arg4[%c0_8, %c0_9] : memref<1x128xf32, #tpu.memory_space<vmem>>, vector<1x128xf32>
    %18 = vector.broadcast %17 : vector<1x128xf32> to vector<16x128xf32>
    %19 = arith.addf %16, %18 : vector<16x128xf32>
    %20 = arith.truncf %19 : vector<16x128xf32> to vector<16x128xbf16>
    %c0_10 = arith.constant 0 : index
    %c0_11 = arith.constant 0 : index
    %21 = vector.load %arg5[%c0_10, %c0_11] : memref<16x128xbf16, #tpu.memory_space<vmem>>, vector<16x128xbf16>
    tpu.vector_store %arg5[%c0_10, %c0_11], %20 {strides = array<i32>} : memref<16x128xbf16, #tpu.memory_space<vmem>>, vector<16x128xbf16>,
    return
  }
  func.func @transform_0(%arg0: i32) -> (i32, i32) {
    %c0_i32 = arith.constant 0 : i32
    %c0_i32_0 = arith.constant 0 : i32
    return %arg0, %c0_i32 : i32, i32
  }
  func.func @transform_1(%arg0: i32) -> (i32, i32) {
    %c0_i32 = arith.constant 0 : i32
    %c0_i32_0 = arith.constant 0 : i32
    %c0_i32_1 = arith.constant 0 : i32
    return %c0_i32, %c0_i32_0 : i32, i32
  }
  func.func @transform_2(%arg0: i32) -> (i32, i32) {
    %c0_i32 = arith.constant 0 : i32
    %c0_i32_0 = arith.constant 0 : i32
    %c0_i32_1 = arith.constant 0 : i32
    return %c0_i32, %c0_i32_0 : i32, i32
  }
  func.func @transform_3(%arg0: i32) -> (i32, i32) {
    %c0_i32 = arith.constant 0 : i32
    %c0_i32_0 = arith.constant 0 : i32
    %c0_i32_1 = arith.constant 0 : i32
    return %c0_i32, %c0_i32_0 : i32, i32
  }
  func.func @transform_4(%arg0: i32) -> (i32, i32) {
    %c0_i32 = arith.constant 0 : i32
    %c0_i32_0 = arith.constant 0 : i32
    return %arg0, %c0_i32 : i32, i32
  }
}

</mosaic_0001>

<llo_original>
// kernel: _qcnn_call.1
$region0: #{_qcnn_call.1}
  #allocation0 [shape = 'u32[]', space=smem, size = 0x4, offset = 0x4, fixed_abs, tag = 'smem constant byte address 0x4 - core index']
  #allocation1 [shape = 'u32[144,128]{1,0:T(1,128)}', space=vmem, size = 0x12000, scoped, tag = 'internal scratch']
  %s0 = inlined_call_operand.hbm [shape: bf16[16,64], index: 0, kind: input, shape index: {}]
  %s1 = inlined_call_operand.hbm [shape: bf16[64,256], index: 1, kind: input, shape index: {}]
  %s2 = inlined_call_operand.hbm [shape: bf16[256,128], index: 2, kind: input, shape index: {}]
  %s3 = inlined_call_operand.vmem [shape: f32[1,128], index: 3, kind: input, shape index: {}]
  %s4 = inlined_call_operand.hbm [shape: bf16[16,128], index: 4, kind: output, shape index: {}]
  %s5 = sld [smem:[#allocation0]]
  $region38: #{_qcnn_call.1} parent=0
    _
  %s7 = ssub.s32 1, %s5
  %s8 = scalar_select 0, %s7, %s5
  $region1: #{_qcnn_call.1} parent=0
    #allocation2 [shape = 'u8[4096]{0}', space=vmem, size = 0x1000, scoped, tag = 'input window, operand 0, single buffered']
    #allocation3 [shape = 's32[1]{0}', space=sflag, size = 0x4, scoped, tag = 'scoped memory for _qcnn_call.1']
    #allocation4 [shape = 's32[1]{0}', space=sflag, size = 0x4, scoped, tag = 'scoped memory for _qcnn_call.1']
    #allocation5 [shape = 'u8[32768]{0}', space=vmem, size = 0x8000, scoped, tag = 'input window, operand 1, single buffered']
    #allocation6 [shape = 's32[1]{0}', space=sflag, size = 0x4, scoped, tag = 'scoped memory for _qcnn_call.1']
    #allocation7 [shape = 'u8[65536]{0}', space=vmem, size = 0x10000, scoped, tag = 'input window, operand 2, single buffered']
    #allocation8 [shape = 'u8[4096]{0}', space=vmem, size = 0x1000, scoped, tag = 'output window, operand 0, single buffered']
    %9 = vsyncpa [#allocation3], 0
    %10 = vsyncpa [#allocation6], 0
    %11 = vsyncpa [#allocation4], 0
    // Predicated region
    $region2: #{_qcnn_call.1} parent=1 // pred_check
      _
    $region3: #{_qcnn_call.1} parent=1 // pred_check_branch
      %13 = sbr.rel (0) target = $region5
    $region4: #{_qcnn_call.1} parent=1 // pred_region
      %s15 = ssub.s32 128, 128
      %16 = vsyncadd [#allocation3], %s15
      %s17 = sshll.u32 [#allocation2], 4
      %s18 = int_to_ptr.vmem [resolvable:$true] %s17
      %23 = dma.hbm_to_vmem [thread:$0]  %s0, 128, %s18, [#allocation3], 64, 64, 4
    $region5: #{_qcnn_call.1} parent=1 // pred_fallthru
      _
    // Predicated region
    $region6: #{_qcnn_call.1} parent=1 // pred_check
      _
    $region7: #{_qcnn_call.1} parent=1 // pred_check_branch
      %25 = sbr.rel (0) target = $region9
    $region8: #{_qcnn_call.1} parent=1 // pred_region
      %s27 = ssub.s32 1024, 1024
      %28 = vsyncadd [#allocation6], %s27
      %s29 = sshll.u32 [#allocation5], 4
      %s30 = int_to_ptr.vmem [resolvable:$true] %s29
      %35 = dma.hbm_to_vmem [thread:$0]  %s1, 1024, %s30, [#allocation6], 128, 128, 8
    $region9: #{_qcnn_call.1} parent=1 // pred_fallthru
      _
    // Predicated region
    $region10: #{_qcnn_call.1} parent=1 // pred_check
      _
    $region11: #{_qcnn_call.1} parent=1 // pred_check_branch
      %37 = sbr.rel (0) target = $region13
    $region12: #{_qcnn_call.1} parent=1 // pred_region
      %s39 = ssub.s32 2048, 2048
      %40 = vsyncadd [#allocation6], %s39
      %s41 = sshll.u32 [#allocation7], 4
      %s42 = int_to_ptr.vmem [resolvable:$true] %s41
      %47 = dma.hbm_to_vmem [thread:$0]  %s2, 2048, %s42, [#allocation6], 64, 64, 4
    $region13: #{_qcnn_call.1} parent=1 // pred_fallthru
      _
    // Predicated region
    $region14: #{_qcnn_call.1} parent=1 // pred_check
      _
    $region15: #{_qcnn_call.1} parent=1 // pred_check_branch
      %49 = sbr.rel (0) target = $region17
    $region16: #{_qcnn_call.1} parent=1 // pred_region
      _
    $region17: #{_qcnn_call.1} parent=1 // pred_fallthru
      _
    // Predicated region
    $region18: #{_qcnn_call.1} parent=1 // pred_check
      _
    $region19: #{_qcnn_call.1} parent=1 // pred_check_branch
      %51 = sbr.rel (0) target = $region21
    $region20: #{_qcnn_call.1} parent=1 // pred_region
      %52 = dma.done [#allocation3], 128
    $region21: #{_qcnn_call.1} parent=1 // pred_fallthru
      _
    // Predicated region
    $region22: #{_qcnn_call.1} parent=1 // pred_check
      _
    $region23: #{_qcnn_call.1} parent=1 // pred_check_branch
      %54 = sbr.rel (0) target = $region25
    $region24: #{_qcnn_call.1} parent=1 // pred_region
      %55 = dma.done [#allocation6], 1024
    $region25: #{_qcnn_call.1} parent=1 // pred_fallthru
      _
    // Predicated region
    $region26: #{_qcnn_call.1} parent=1 // pred_check
      _
    $region27: #{_qcnn_call.1} parent=1 // pred_check_branch
      %57 = sbr.rel (0) target = $region29
    $region28: #{_qcnn_call.1} parent=1 // pred_region
      %58 = dma.done [#allocation6], 2048
    $region29: #{_qcnn_call.1} parent=1 // pred_fallthru
      _
    %v60 = vld [vmem:[#allocation2] sm:$0xf]
    %v61 = vld [vmem:[#allocation2 + $0x4] sm:$0xf]
    %v62 = vunpack.c.l.bf16 %v60
    %v63 = vunpack.c.l.bf16 %v61
    %v64 = vmul.f32 %v62, %v62
    %v65 = vmul.f32 %v63, %v63
    %vm66 = vcmask 523264
    %v67 = vsel %vm66, %v64, 0.0
    %68 = vadd.xlane.f32.xlu0 %v67
    %v69 = vpop.xlane.xlu0 %68
    %v70 = vsel %vm66, %v65, 0.0
    %71 = vadd.xlane.f32.xlu0 %v70
    %v72 = vpop.xlane.xlu0 %71
    %v73 = vadd.f32 %v69, 1e-12
    %v74 = vadd.f32 %v72, 1e-12
    %v75 = vrsqrt.pop %v73
    %v76 = vrsqrt.pop %v74
    %v77 = vmul.f32 %v62, %v75
    %v78 = vmul.f32 %v63, %v76
    %v79 = vpack.c.bf16 %v78, %v77
    %v80 = vld [vmem:[#allocation5] sm:$0xff]
    %v81 = vld [vmem:[#allocation5 + $0x8] sm:$0xff]
    %v82 = vld [vmem:[#allocation5 + $0x10] sm:$0xff]
    %v83 = vld [vmem:[#allocation5 + $0x18] sm:$0xff]
    %v84 = vld [vmem:[#allocation5 + $0x20] sm:$0xff]
    %v85 = vld [vmem:[#allocation5 + $0x28] sm:$0xff]
    %v86 = vld [vmem:[#allocation5 + $0x30] sm:$0xff]
    %v87 = vld [vmem:[#allocation5 + $0x38] sm:$0xff]
    %v96 = vunpack.c.l.b16 %v80
    %v97 = vunpack.c.h.b16 %v80
    %v98 = vunpack.c.l.b16 %v81
    %v99 = vunpack.c.h.b16 %v81
    %v100 = vunpack.c.l.b16 %v82
    %v101 = vunpack.c.h.b16 %v82
    %v102 = vunpack.c.l.b16 %v83
    %v103 = vunpack.c.h.b16 %v83
    %v104 = vunpack.c.l.b16 %v84
    %v105 = vunpack.c.h.b16 %v84
    %v106 = vunpack.c.l.b16 %v85
    %v107 = vunpack.c.h.b16 %v85
    %v108 = vunpack.c.l.b16 %v86
    %v109 = vunpack.c.h.b16 %v86
    %v110 = vunpack.c.l.b16 %v87
    %v111 = vunpack.c.h.b16 %v87
    %v112 = vpack.c.b16 %v98, %v96
    %v113 = vpack.c.b16 %v99, %v97
    %v114 = vpack.c.b16 %v102, %v100
    %v115 = vpack.c.b16 %v103, %v101
    %v116 = vpack.c.b16 %v106, %v104
    %v117 = vpack.c.b16 %v107, %v105
    %v118 = vpack.c.b16 %v110, %v108
    %v119 = vpack.c.b16 %v111, %v109
    %v129 = vsel %vm66, %v79, 0
    %131 = vmatprep.subr.bf16.mxu0 %v113
    %132 = vmatpush1.bf16.msra.mxu0 %v112
    %133 = vmatprep.subr.bf16.mxu0 %v115
    %134 = vmatpush1.bf16.msra.mxu0 %v114
    %135 = vmatprep.subr.bf16.mxu0 %v117
    %136 = vmatpush1.bf16.msra.mxu0 %v116
    %137 = vmatprep.subr.bf16.mxu0 %v119
    %138 = vmatpush1.bf16.msra.mxu0 %v118
    %139 = vmatprep.subr.bf16.mxu0 0
    %140 = vmatpush1.bf16.msra.mxu0 0
    %141 = vmatprep.subr.bf16.mxu0 0
    %142 = vmatpush1.bf16.msra.mxu0 0
    %143 = vmatprep.subr.bf16.mxu0 0
    %144 = vmatpush1.bf16.msra.mxu0 0
    %145 = vmatprep.subr.bf16.mxu0 0
    %146 = vmatpush1.bf16.msra.mxu0 0
    %147 = vmatprep.subr.bf16.mxu0 0
    %148 = vmatpush1.bf16.msra.mxu0 0
    %149 = vmatprep.subr.bf16.mxu0 0
    %150 = vmatpush1.bf16.msra.mxu0 0
    %151 = vmatprep.subr.bf16.mxu0 0
    %152 = vmatpush1.bf16.msra.mxu0 0
    %153 = vmatprep.subr.bf16.mxu0 0
    %154 = vmatpush1.bf16.msra.mxu0 0
    %155 = vmatprep.subr.bf16.mxu0 0
    %156 = vmatpush1.bf16.msra.mxu0 0
    %157 = vmatprep.subr.bf16.mxu0 0
    %158 = vmatpush1.bf16.msra.mxu0 0
    %159 = vmatprep.subr.bf16.mxu0 0
    %160 = vmatpush1.bf16.msra.mxu0 0
    %161 = vmatprep.subr.bf16.mxu0 0
    %162 = vmatpush1.bf16.msra.mxu0 0
    %163 = vmatprep.mubr.bf16.mxu0 0
    %164 = vmatmul.mubr.bf16.gmra.mrb[0].mxu0 %v129
    %v165 = vpop.f32.mrb[0].mxu0
    %v166 = vadd.f32 0.0, %v165
    %v167 = vpop.f32.mrb[0].mxu0
    %v168 = vadd.f32 0.0, %v167
    %v169 = vpop.f32.mrb[0].mxu0
    %v170 = vadd.f32 0.0, %v169
    %v171 = vpop.f32.mrb[0].mxu0
    %v172 = vadd.f32 0.0, %v171
    %173 = vdwg.mxu0
    %v174 = vmul.f32 %v166, %v166
    %v175 = vmul.f32 %v168, %v168
    %v176 = vmul.f32 %v170, %v170
    %v177 = vmul.f32 %v172, %v172
    %v178 = vpack.c.bf16 %v176, %v174
    %v179 = vpack.c.bf16 %v177, %v175
    %v180 = vld [vmem:[#allocation7] sm:$0xf]
    %v181 = vld [vmem:[#allocation7 + $0x4] sm:$0xf]
    %v182 = vld [vmem:[#allocation7 + $0x8] sm:$0xf]
    %v183 = vld [vmem:[#allocation7 + $0xc] sm:$0xf]
    %v184 = vld [vmem:[#allocation7 + $0x10] sm:$0xf]
    %v185 = vld [vmem:[#allocation7 + $0x14] sm:$0xf]
    %v186 = vld [vmem:[#allocation7 + $0x18] sm:$0xf]
    %v187 = vld [vmem:[#allocation7 + $0x1c] sm:$0xf]
    %v188 = vld [vmem:[#allocation7 + $0x20] sm:$0xf]
    %v189 = vld [vmem:[#allocation7 + $0x24] sm:$0xf]
    %v190 = vld [vmem:[#allocation7 + $0x28] sm:$0xf]
    %v191 = vld [vmem:[#allocation7 + $0x2c] sm:$0xf]
    %v192 = vld [vmem:[#allocation7 + $0x30] sm:$0xf]
    %v193 = vld [vmem:[#allocation7 + $0x34] sm:$0xf]
    %v194 = vld [vmem:[#allocation7 + $0x38] sm:$0xf]
    %v195 = vld [vmem:[#allocation7 + $0x3c] sm:$0xf]
    %v196 = vld [vmem:[#allocation7 + $0x40] sm:$0xf]
    %v197 = vld [vmem:[#allocation7 + $0x44] sm:$0xf]
    %v198 = vld [vmem:[#allocation7 + $0x48] sm:$0xf]
    %v199 = vld [vmem:[#allocation7 + $0x4c] sm:$0xf]
    %v200 = vld [vmem:[#allocation7 + $0x50] sm:$0xf]
    %v201 = vld [vmem:[#allocation7 + $0x54] sm:$0xf]
    %v202 = vld [vmem:[#allocation7 + $0x58] sm:$0xf]
    %v203 = vld [vmem:[#allocation7 + $0x5c] sm:$0xf]
    %v204 = vld [vmem:[#allocation7 + $0x60] sm:$0xf]
    %v205 = vld [vmem:[#allocation7 + $0x64] sm:$0xf]
    %v206 = vld [vmem:[#allocation7 + $0x68] sm:$0xf]
    %v207 = vld [vmem:[#allocation7 + $0x6c] sm:$0xf]
    %v208 = vld [vmem:[#allocation7 + $0x70] sm:$0xf]
    %v209 = vld [vmem:[#allocation7 + $0x74] sm:$0xf]
    %v210 = vld [vmem:[#allocation7 + $0x78] sm:$0xf]
    %v211 = vld [vmem:[#allocation7 + $0x7c] sm:$0xf]
    %v212 = vld [vmem:[%s3] sm:$0x1]
    %v214 = vlaneseq
    %v215 = vshrl.u32 %v214, 7
    %v216 = vsub.s32 0, %v215
    %v217 = vrot.slane %v212, %v216
    %v251 = vunpack.c.l.b16 %v180
    %v252 = vunpack.c.l.b16 %v181
    %v253 = vunpack.c.l.b16 %v182
    %v254 = vunpack.c.l.b16 %v183
    %v255 = vunpack.c.l.b16 %v184
    %v256 = vunpack.c.l.b16 %v185
    %v257 = vunpack.c.l.b16 %v186
    %v258 = vunpack.c.l.b16 %v187
    %v259 = vunpack.c.l.b16 %v188
    %v260 = vunpack.c.l.b16 %v189
    %v261 = vunpack.c.l.b16 %v190
    %v262 = vunpack.c.l.b16 %v191
    %v263 = vunpack.c.l.b16 %v192
    %v264 = vunpack.c.l.b16 %v193
    %v265 = vunpack.c.l.b16 %v194
    %v266 = vunpack.c.l.b16 %v195
    %v267 = vunpack.c.l.b16 %v196
    %v268 = vunpack.c.l.b16 %v197
    %v269 = vunpack.c.l.b16 %v198
    %v270 = vunpack.c.l.b16 %v199
    %v271 = vunpack.c.l.b16 %v200
    %v272 = vunpack.c.l.b16 %v201
    %v273 = vunpack.c.l.b16 %v202
    %v274 = vunpack.c.l.b16 %v203
    %v275 = vunpack.c.l.b16 %v204
    %v276 = vunpack.c.l.b16 %v205
    %v277 = vunpack.c.l.b16 %v206
    %v278 = vunpack.c.l.b16 %v207
    %v279 = vunpack.c.l.b16 %v208
    %v280 = vunpack.c.l.b16 %v209
    %v281 = vunpack.c.l.b16 %v210
    %v282 = vunpack.c.l.b16 %v211
    %v283 = vpack.c.b16 %v252, %v251
    %v284 = vpack.c.b16 %v254, %v253
    %v285 = vpack.c.b16 %v256, %v255
    %v286 = vpack.c.b16 %v258, %v257
    %v287 = vpack.c.b16 %v260, %v259
    %v288 = vpack.c.b16 %v262, %v261
    %v289 = vpack.c.b16 %v264, %v263
    %v290 = vpack.c.b16 %v266, %v265
    %v291 = vpack.c.b16 %v268, %v267
    %v292 = vpack.c.b16 %v270, %v269
    %v293 = vpack.c.b16 %v272, %v271
    %v294 = vpack.c.b16 %v274, %v273
    %v295 = vpack.c.b16 %v276, %v275
    %v296 = vpack.c.b16 %v278, %v277
    %v297 = vpack.c.b16 %v280, %v279
    %v298 = vpack.c.b16 %v282, %v281
    %315 = vmatprep.subr.bf16.mxu0 0
    %316 = vmatpush1.bf16.msra.mxu0 %v283
    %317 = vmatprep.subr.bf16.mxu0 0
    %318 = vmatpush1.bf16.msra.mxu0 %v284
    %319 = vmatprep.subr.bf16.mxu0 0
    %320 = vmatpush1.bf16.msra.mxu0 %v285
    %321 = vmatprep.subr.bf16.mxu0 0
    %322 = vmatpush1.bf16.msra.mxu0 %v286
    %323 = vmatprep.subr.bf16.mxu0 0
    %324 = vmatpush1.bf16.msra.mxu0 %v287
    %325 = vmatprep.subr.bf16.mxu0 0
    %326 = vmatpush1.bf16.msra.mxu0 %v288
    %327 = vmatprep.subr.bf16.mxu0 0
    %328 = vmatpush1.bf16.msra.mxu0 %v289
    %329 = vmatprep.subr.bf16.mxu0 0
    %330 = vmatpush1.bf16.msra.mxu0 %v290
    %331 = vmatprep.subr.bf16.mxu0 0
    %332 = vmatpush1.bf16.msra.mxu0 %v291
    %333 = vmatprep.subr.bf16.mxu0 0
    %334 = vmatpush1.bf16.msra.mxu0 %v292
    %335 = vmatprep.subr.bf16.mxu0 0
    %336 = vmatpush1.bf16.msra.mxu0 %v293
    %337 = vmatprep.subr.bf16.mxu0 0
    %338 = vmatpush1.bf16.msra.mxu0 %v294
    %339 = vmatprep.subr.bf16.mxu0 0
    %340 = vmatpush1.bf16.msra.mxu0 %v295
    %341 = vmatprep.subr.bf16.mxu0 0
    %342 = vmatpush1.bf16.msra.mxu0 %v296
    %343 = vmatprep.subr.bf16.mxu0 0
    %344 = vmatpush1.bf16.msra.mxu0 %v297
    %345 = vmatprep.subr.bf16.mxu0 0
    %346 = vmatpush1.bf16.msra.mxu0 %v298
    %347 = vmatprep.mubr.bf16.mxu0 %v179
    %348 = vmatmul.mubr.bf16.gmra.mrb[0].mxu0 %v178
    %v349 = vpop.f32.mrb[0].mxu0
    %v350 = vadd.f32 %v217, %v349
    %v351 = vpop.f32.mrb[0].mxu0
    %v352 = vpop.f32.mrb[0].mxu0
    %v353 = vadd.f32 %v217, %v352
    %v354 = vpop.f32.mrb[0].mxu0
    %355 = vdwg.mxu0
    %v356 = vpack.c.bf16 %v353, %v350
    %v358 = vunpack.c.l.b16 %v356
    %v359 = vunpack.c.h.b16 %v356
    %v360 = vpack.c.b16 %v358, %v358
    %v361 = vpack.c.b16 %v359, %v359
    %364 = vst [vmem:[#allocation8] sm:$0xf] %v360
    %365 = vst [vmem:[#allocation8 + $0x4] sm:$0xf] %v361
    // Predicated region
    $region30: #{_qcnn_call.1} parent=1 // pred_check
      _
    $region31: #{_qcnn_call.1} parent=1 // pred_check_branch
      %367 = sbr.rel (0) target = $region33
    $region32: #{_qcnn_call.1} parent=1 // pred_region
      %s369 = ssub.s32 128, 128
      %370 = vsyncadd [#allocation4], %s369
      %s371 = sshll.u32 [#allocation8], 4
      %s372 = int_to_ptr.vmem [resolvable:$true] %s371
      %377 = dma.vmem_to_hbm [thread:$0]  %s372, 128, %s4, [#allocation4], 64, 64, 4
    $region33: #{_qcnn_call.1} parent=1 // pred_fallthru
      _
    // Predicated region
    $region34: #{_qcnn_call.1} parent=1 // pred_check
      _
    $region35: #{_qcnn_call.1} parent=1 // pred_check_branch
      %379 = sbr.rel (0) target = $region37
    $region36: #{_qcnn_call.1} parent=1 // pred_region
      %380 = dma.done [#allocation4], 128
    $region37: #{_qcnn_call.1} parent=1 // pred_fallthru
      _
    %381 = vsyncpa [#allocation3], 1
    %382 = vsyncpa [#allocation6], 1
    %383 = vsyncpa [#allocation4], 1

</llo_original>
